<compile_context>
chip_gen: v6e
topology: v6e:2x2x1
jax: 0.10.0
libtpu: 0.0.40
codegen_flags: <defaults>
</compile_context>

<pallas_src>
import functools
import math

import jax
import jax.numpy as jnp
import numpy as np
from jax import lax
from jax.experimental import pallas as pl
from jax.experimental.pallas import tpu as pltpu


# ----------------------------- helpers ------------------------------------- #
def mask_np(kH, kW, mask_type="B"):
    """Autoregressive mask identical to MaskedConv2d._build_mask (numpy)."""
    m = np.ones((kH, kW), np.float32)
    cy, cx = kH // 2, kW // 2
    m[cy + 1:, :] = 0
    m[cy, cx + 1:] = 0
    if mask_type == "A":
        m[cy, cx] = 0
    return m


def _round_up(x, m):
    return ((x + m - 1) // m) * m


@functools.lru_cache(maxsize=None)
def _pltpu_roll_matches_np_roll() -> bool:
    """One-time cached probe: does pltpu.roll follow np.roll semantics
    (out[j] = in[(j - shift) mod N])?  Guards the shift-sign convention."""
    def probe(x_ref, o_ref):
        o_ref[...] = pltpu.roll(x_ref[...], 1, axis=1)

    x = jnp.broadcast_to(jnp.arange(128, dtype=jnp.float32), (8, 128))
    y = pl.pallas_call(
        probe, out_shape=jax.ShapeDtypeStruct((8, 128), jnp.float32))(x)
    return bool(np.asarray(y)[0, 0] == 127.0)


# ----------------------------- Pallas kernel ------------------------------- #
def _make_kernel(C, W, n_dy, dxs, np_roll_like):
    """Kernel closure.  Input slab rows: [v(dy=-2); v(dy=-1); v(dy=0); h]."""
    KIN = (n_dy + 1) * C                       # rows of the fused input slab

    def kernel(x_ref, wstack_ref, bstack_ref, wr_ref, br_ref, out_ref):
        TM = x_ref.shape[1]
        x = x_ref[...]                         # (KIN, TM) f32, lane-dense
        ws = wstack_ref[...]                   # (len(dxs)*4C, KIN)

        # Within-row x coordinate of every lane.  Valid because TM % W == 0 and
        # every tile starts on a row boundary (M is a multiple of W).
        lane = lax.broadcasted_iota(jnp.int32, (KIN, TM), 1)
        xw = (lane & (W - 1)) if (W & (W - 1)) == 0 else (lane % W)

        # Accumulate ver (rows [0,2C)) and hor (rows [2C,4C)) over the 5 column
        # offsets.  Each dx needs one XLU roll + one mask-select + one matmul.
        acc = jnp.zeros((4 * C, TM), jnp.float32)
        for i, dx in enumerate(dxs):
            if dx == 0:
                xs = x
            else:
                shift = ((-dx) % TM) if np_roll_like else (dx % TM)
                rolled = pltpu.roll(x, shift, axis=1)      # out[p] = x[p + dx]
                if dx < 0:   # left taps: first |dx| columns of a row are padding
                    xs = jnp.where(xw >= -dx, rolled, 0.0)
                else:        # right taps: last dx columns of a row are padding
                    xs = jnp.where(xw < W - dx, rolled, 0.0)
            w_dx = ws[4 * C * i:4 * C * (i + 1), :]        # (4C, KIN)
            acc = acc + jnp.dot(w_dx, xs, preferred_element_type=jnp.float32)
        acc = acc + bstack_ref[...]                        # fused biases

        ver = acc[:2 * C, :]
        hor = acc[2 * C:, :]

        # gated activation: tanh(A) * sigmoid(B) (split along channels)
        v_out = jnp.tanh(ver[:C, :]) * jax.nn.sigmoid(ver[C:, :])
        h_gate = jnp.tanh(hor[:C, :]) * jax.nn.sigmoid(hor[C:, :])

        # residual 1x1 conv + skip (skip input = the h rows of the slab)
        h_out = (jnp.dot(wr_ref[...], h_gate, preferred_element_type=jnp.float32)
                 + br_ref[...] + x[n_dy * C:, :])

        # two direct lane-dense sub-stores (no sublane concatenate)
        out_ref[:C, :] = v_out.astype(out_ref.dtype)
        out_ref[C:, :] = h_out.astype(out_ref.dtype)

    return kernel


# ------------------------------- glue (JAX) -------------------------------- #
def init_params(C, ks, key):
    keys = jax.random.split(key, 8)

    def u(k, shape, fan_in):
        bound = 1.0 / np.sqrt(fan_in)
        return jax.random.uniform(k, shape, jnp.float32, -bound, bound)

    return dict(
        wv=u(keys[0], (2 * C, C, ks, ks), C * ks * ks),
        bv=u(keys[1], (2 * C,), C * ks * ks),
        wh=u(keys[2], (2 * C, C, 1, ks), C * ks),
        bh=u(keys[3], (2 * C,), C * ks),
        wvh=u(keys[4], (2 * C, 2 * C, 1, 1), 2 * C),
        bvh=u(keys[5], (2 * C,), 2 * C),
        wr=u(keys[6], (C, C, 1, 1), C),
        br=u(keys[7], (C,), C),
    )


def gated_pixelcnn_block(v_nchw, h_nchw, params, *, kernel_size=5):
    N, C, H, W = v_nchw.shape
    ks = kernel_size
    r = ks // 2
    dys = tuple(range(-r, 1))        # kept vertical row offsets (type-B mask)
    dxs = tuple(range(-r, r + 1))    # all column offsets; dropped taps get 0 weight
    n_dy = len(dys)
    M = N * H * W

    # ---- fused weights: fold Wvh into the vp path, and the h path alongside ----
    wv, wh = params["wv"], params["wh"]
    wvh = params["wvh"][:, :, 0, 0]                        # (2C, 2C)
    wr = params["wr"][:, :, 0, 0]                          # (C,  C)
    bv = params["bv"].reshape(2 * C, 1)
    bh = params["bh"].reshape(2 * C, 1)
    bvh = params["bvh"].reshape(2 * C, 1)
    br = params["br"].reshape(C, 1)
    mv = mask_np(ks, ks, "B")
    mh = mask_np(1, ks, "B")

    blocks = []
    for dx in dxs:
        kx = dx + r
        a_dx = jnp.concatenate(                            # (2C, n_dy*C) vertical taps
            [wv[:, :, dy + r, kx] * float(mv[dy + r, kx]) for dy in dys], axis=1)
        h_dx = wh[:, :, 0, kx] * float(mh[0, kx])          # (2C, C) horizontal tap
        top = jnp.concatenate([a_dx, jnp.zeros((2 * C, C), a_dx.dtype)], axis=1)
        bot = jnp.concatenate([wvh @ a_dx, h_dx], axis=1)  # Wvh folded into vp path
        blocks.append(jnp.concatenate([top, bot], axis=0)) # (4C, (n_dy+1)*C)
    wstack = jnp.concatenate(blocks, axis=0)               # (5*4C, (n_dy+1)*C)
    bstack = jnp.concatenate([bv, bh + bvh + wvh @ bv], axis=0)   # (4C, 1)

    # ---- fused input slab: 3 row-shifted copies of v + h (also the residual) ----
    rows = []
    for dy in dys:
        sv = v_nchw if dy == 0 else jnp.pad(
            v_nchw, ((0, 0), (0, 0), (-dy, 0), (0, 0)))[:, :, :H, :]
        rows.append(jnp.transpose(sv, (1, 0, 2, 3)).reshape(C, M))
    rows.append(jnp.transpose(h_nchw, (1, 0, 2, 3)).reshape(C, M))
    x_slab = jnp.concatenate(rows, axis=0)                 # ((n_dy+1)*C, M)

    # ---- tile size: lane-aligned AND row-aligned; keep >=4 grid steps ----
    tm_base = 128 * W // math.gcd(128, W)                  # smallest legal TM
    TM = tm_base
    while TM * 2 <= 1024 and pl.cdiv(M, TM * 2) >= 4:
        TM *= 2
    Mp = _round_up(M, TM)
    if Mp != M:
        x_slab = jnp.pad(x_slab, ((0, 0), (0, Mp - M)))

    KIN = (n_dy + 1) * C
    vmem_bytes = int(min(32 * 2 ** 20, max(4 * 2 ** 20, 48 * KIN * TM)))

    kernel = _make_kernel(C, W, n_dy, dxs, _pltpu_roll_matches_np_roll())
    out = pl.pallas_call(
        kernel,
        out_shape=jax.ShapeDtypeStruct((2 * C, Mp), jnp.float32),
        grid_spec=pltpu.PrefetchScalarGridSpec(
            num_scalar_prefetch=0,
            grid=(Mp // TM,),
            in_specs=[pl.BlockSpec((KIN, TM), lambda i: (0, i)),
                      pl.BlockSpec((len(dxs) * 4 * C, KIN), lambda i: (0, 0)),
                      pl.BlockSpec((4 * C, 1), lambda i: (0, 0)),
                      pl.BlockSpec((C, C), lambda i: (0, 0)),
                      pl.BlockSpec((C, 1), lambda i: (0, 0))],
            out_specs=pl.BlockSpec((2 * C, TM), lambda i: (0, i)),
        ),
        compiler_params=pltpu.CompilerParams(
            dimension_semantics=("parallel",),
            vmem_limit_bytes=vmem_bytes),
    )(x_slab, wstack, bstack, wr, br)

    v_out = out[:C, :M].reshape(C, N, H, W).transpose(1, 0, 2, 3)
    h_out = out[C:, :M].reshape(C, N, H, W).transpose(1, 0, 2, 3)
    return v_out, h_out


# --------------------------- plain-JAX reference --------------------------- #
def reference_block(v, h, params, *, kernel_size=5):
    ks = kernel_size

    def conv(x, w, b, pad):
        out = lax.conv_general_dilated(
            x, w, (1, 1), ((pad[0], pad[0]), (pad[1], pad[1])),
            dimension_numbers=("NCHW", "OIHW", "NCHW"))
        return out + b[None, :, None, None]

    def gate(x):
        a, b = jnp.split(x, 2, axis=1)
        return jnp.tanh(a) * jax.nn.sigmoid(b)

    ver = conv(v, params["wv"] * jnp.asarray(mask_np(ks, ks))[None, None],
               params["bv"], (ks // 2, ks // 2))
    hor = conv(h, params["wh"] * jnp.asarray(mask_np(1, ks))[None, None],
               params["bh"], (0, ks // 2))
    hor = hor + conv(ver, params["wvh"], params["bvh"], (0, 0))
    v_out = gate(ver)
    h_out = conv(gate(hor), params["wr"], params["br"], (0, 0)) + h
    return v_out, h_out


if __name__ == "__main__":
    N, C, H, W = 2, 4, 16, 16
    KS = 5
    key = jax.random.PRNGKey(0)
    kv_key, kh_key, kp_key = jax.random.split(key, 3)
    v_in = jax.random.normal(kv_key, (N, C, H, W), jnp.float32)
    h_in = jax.random.normal(kh_key, (N, C, H, W), jnp.float32)
    params = init_params(C, KS, kp_key)

    v_out, h_out = gated_pixelcnn_block(v_in, h_in, params, kernel_size=KS)
    jax.block_until_ready((v_out, h_out))

    v_ref, h_ref = reference_block(v_in, h_in, params, kernel_size=KS)
    # 1e-4 tolerance: the Wvh@Wv fold reassociates one matmul chain (f32); any
    # real bug (wrong tap/shift/mask) produces O(1) errors and still trips this.
    np.testing.assert_allclose(np.asarray(v_out), np.asarray(v_ref),
                               rtol=1e-4, atol=1e-4)
    np.testing.assert_allclose(np.asarray(h_out), np.asarray(h_ref),
                               rtol=1e-4, atol=1e-4)
    print("KERNEL_OK")
</pallas_src>

<mosaic_0001>
module attributes {stable_mosaic.version = 11 : i64} {
  func.func @probe(%arg0: memref<8x128xf32, #tpu.memory_space<vmem>>, %arg1: memref<8x128xf32, #tpu.memory_space<vmem>>) attributes {dimension_semantics = [], scalar_prefetch = 0 : i64, scratch_operands = 0 : i64, tpu.core_type = #tpu.core_type<tc>} {
    %c0 = arith.constant 0 : index
    %c0_0 = arith.constant 0 : index
    %0 = vector.load %arg0[%c0, %c0_0] : memref<8x128xf32, #tpu.memory_space<vmem>>, vector<8x128xf32>
    %c1_i32 = arith.constant 1 : i32
    %1 = tpu.dynamic_rotate %0 by %c1_i32 dim 1 : vector<8x128xf32>, i32 -> vector<8x128xf32>
    %c0_1 = arith.constant 0 : index
    %c0_2 = arith.constant 0 : index
    %2 = vector.load %arg1[%c0_1, %c0_2] : memref<8x128xf32, #tpu.memory_space<vmem>>, vector<8x128xf32>
    tpu.vector_store %arg1[%c0_1, %c0_2], %1 {strides = array<i32>} : memref<8x128xf32, #tpu.memory_space<vmem>>, vector<8x128xf32>,
    return
  }
}

</mosaic_0001>

<llo_original>
// kernel: tpu_custom_call.1
$region0: #{tpu_custom_call.1}
  #allocation0 [shape = 'u32[]', space=smem, size = 0x4, offset = 0x4, fixed_abs, tag = 'smem constant byte address 0x4 - core index']
  #allocation1 [shape = 'u32[144,128]{1,0:T(1,128)}', space=vmem, size = 0x12000, scoped, tag = 'internal scratch']
  %s0 = inlined_call_operand.hbm [shape: f32[8,128], index: 0, kind: input, shape index: {}]
  %s1 = inlined_call_operand.hbm [shape: f32[8,128], index: 1, kind: output, shape index: {}]
  %s2 = sld [smem:[#allocation0]]
  $region18: #{tpu_custom_call.1} parent=0
    _
  %s4 = ssub.s32 1, %s2
  %s5 = scalar_select 0, %s4, %s2
  $region1: #{tpu_custom_call.1} parent=0
    #allocation2 [shape = 'u8[4096]{0}', space=vmem, size = 0x1000, scoped, tag = 'input window, operand 0, single buffered']
    #allocation3 [shape = 's32[1]{0}', space=sflag, size = 0x4, scoped, tag = 'scoped memory for tpu_custom_call.1']
    #allocation4 [shape = 's32[1]{0}', space=sflag, size = 0x4, scoped, tag = 'scoped memory for tpu_custom_call.1']
    #allocation5 [shape = 'u8[4096]{0}', space=vmem, size = 0x1000, scoped, tag = 'output window, operand 0, single buffered']
    %6 = vsyncpa [#allocation3], 0
    %7 = vsyncpa [#allocation4], 0
    // Predicated region
    $region2: #{tpu_custom_call.1} parent=1 // pred_check
      _
    $region3: #{tpu_custom_call.1} parent=1 // pred_check_branch
      %9 = sbr.rel (0) target = $region5
    $region4: #{tpu_custom_call.1} parent=1 // pred_region
      %s11 = ssub.s32 128, 128
      %12 = vsyncadd [#allocation3], %s11
      %s14 = sshll.u32 [#allocation2], 4
      %s15 = int_to_ptr.vmem [resolvable:$true] %s14
      %17 = dma.hbm_to_vmem [thread:$0]  %s0, 128, %s15, [#allocation3]
    $region5: #{tpu_custom_call.1} parent=1 // pred_fallthru
      _
    // Predicated region
    $region6: #{tpu_custom_call.1} parent=1 // pred_check
      _
    $region7: #{tpu_custom_call.1} parent=1 // pred_check_branch
      %19 = sbr.rel (0) target = $region9
    $region8: #{tpu_custom_call.1} parent=1 // pred_region
      %20 = dma.done [#allocation3], 128
    $region9: #{tpu_custom_call.1} parent=1 // pred_fallthru
      _
    %v21 = vld [vmem:[#allocation2] sm:$0xff]
    %22 = vrot.lane.b32.xlu0 %v21, 1
    %v23 = vpop.permute.xlu0 %22
    %24 = vst [vmem:[#allocation5] sm:$0xff] %v23
    // Predicated region
    $region10: #{tpu_custom_call.1} parent=1 // pred_check
      _
    $region11: #{tpu_custom_call.1} parent=1 // pred_check_branch
      %26 = sbr.rel (0) target = $region13
    $region12: #{tpu_custom_call.1} parent=1 // pred_region
      %s28 = ssub.s32 128, 128
      %29 = vsyncadd [#allocation4], %s28
      %s31 = sshll.u32 [#allocation5], 4
      %s32 = int_to_ptr.vmem [resolvable:$true] %s31
      %34 = dma.vmem_to_hbm [thread:$0]  %s32, 128, %s1, [#allocation4]
    $region13: #{tpu_custom_call.1} parent=1 // pred_fallthru
      _
    // Predicated region
    $region14: #{tpu_custom_call.1} parent=1 // pred_check
      _
    $region15: #{tpu_custom_call.1} parent=1 // pred_check_branch
      %36 = sbr.rel (0) target = $region17
    $region16: #{tpu_custom_call.1} parent=1 // pred_region
      %37 = dma.done [#allocation4], 128
    $region17: #{tpu_custom_call.1} parent=1 // pred_fallthru
      _
    %38 = vsyncpa [#allocation3], 1
    %39 = vsyncpa [#allocation4], 1

</llo_original>
